<compile_context>
chip_gen: v6e
topology: v6e:2x2x1
jax: 0.10.0
libtpu: 0.0.40
codegen_flags: <defaults>
</compile_context>

<pallas_src>
import jax
import jax.numpy as jnp
from jax.experimental import pallas as pl
from jax.experimental.pallas import tpu as pltpu

LN_EPS = 1e-5   # nn.LayerNorm default eps


def _vit_enc_kernel(x_ref, we_ref, be_ref, wc_ref, bc_ref, o_ref):
    # x_ref : (Ct, tT)  input tokens, channel-major (channels on sublanes)
    # we_ref: (Cw, Ct)  bf16  encoder_embed weight, ln_pre gamma folded in
    # be_ref: (Cw, 1)   f32   encoder_embed bias,   ln_pre beta  folded in
    # wc_ref: (Ct, Cw)  bf16  conv_out (1x1) weight, ln_post gamma folded in
    # bc_ref: (Ct, 1)   f32   conv_out bias,         ln_post beta  folded in
    # o_ref : (Ct, tT)
    x = x_ref[...].astype(jnp.float32)

    # ---- ln_pre statistics (affine folded into we/be); centered variance ----
    mu = jnp.mean(x, axis=0, keepdims=True)
    xc = x - mu
    var = jnp.mean(xc * xc, axis=0, keepdims=True)
    xn = xc * jax.lax.rsqrt(var + LN_EPS)

    # ---- encoder_embed: width x token_size MXU matmul, bf16 in / f32 acc ----
    h = jnp.dot(we_ref[...], xn.astype(jnp.bfloat16),
                preferred_element_type=jnp.float32) + be_ref[...]

    # TODO(synk): transformer stack (QformerLayerVar / TransformerLayer /
    # TransformerDecoderLayer) and the positional embedding it consumes are
    # defined outside this module spec and are not implemented here.

    # ---- ln_post statistics (affine folded into wc/bc) ----
    mu2 = jnp.mean(h, axis=0, keepdims=True)
    hc = h - mu2
    var2 = jnp.mean(hc * hc, axis=0, keepdims=True)
    hn = hc * jax.lax.rsqrt(var2 + LN_EPS)

    # ---- conv_out: 1x1 conv == Linear(width -> token_size) ----
    out = jnp.dot(wc_ref[...], hn.astype(jnp.bfloat16),
                  preferred_element_type=jnp.float32) + bc_ref[...]
    o_ref[...] = out.astype(o_ref.dtype)


def _vmem_capacity_bytes():
    """Physical per-core VMEM; falls back to the v7x minimum (64 MiB)."""
    try:
        cap = getattr(pltpu.get_tpu_info(), "vmem_capacity_bytes", None)
        if cap:
            return int(cap)
    except Exception:
        pass
    return 64 << 20


def _tile_bytes(t, ct, cw, io_bytes):
    """VMEM needed for a token tile of t: double-buffered I/O tiles, the
    (double-buffered) bf16 weights + bias columns, and the in-kernel f32/bf16
    intermediates (x/xn/out, h/hc/hn and the bf16 copies fed to the MXU)."""
    return (2 * ct * t * io_bytes * 2          # in + out tile, double-buffered
            + 2 * 2 * cw * ct * 2              # two bf16 weight mats, dbl-buf
            + 2 * 2 * (cw + ct) * 4            # bias columns, dbl-buf
            + t * (3 * ct + 3 * cw) * 4        # f32 intermediates
            + t * (ct + cw) * 2)               # bf16 matmul operands


def _pick_token_tile(hw, ct, cw, io_bytes, budget):
    """Full HW if it fits, else the largest multiple-of-128 divisor of HW that
    fits the VMEM budget (keeps blocks lane-aligned and the grid exact)."""
    if hw <= 128 or _tile_bytes(hw, ct, cw, io_bytes) <= budget:
        return hw
    divs = [t for t in range(128, hw, 128) if hw % t == 0]
    fit = [t for t in divs if _tile_bytes(t, ct, cw, io_bytes) <= budget]
    if fit:
        return max(fit)
    return min(divs) if divs else hw


@jax.jit
def vit_encoder_2d(x_nchw, w_embed, b_embed, g_pre, b_pre,
                   g_post, b_post, w_conv, b_conv):
    """x_nchw: (B, token_size, H, W); w_embed: (width, token_size) nn.Linear;
    w_conv: (token_size, width, 1, 1) nn.Conv2d 1x1. Returns (B, token_size, H, W)."""
    B, Ct, H, W = x_nchw.shape
    Cw = w_embed.shape[0]
    HW = H * W
    assert Ct % 8 == 0 and Cw % 8 == 0 and HW % 8 == 0

    hi = jax.lax.Precision.HIGHEST
    # Fold LayerNorm affines into the adjacent Linear / 1x1-conv (exact):
    #   encoder_embed(ln_pre(x)) = (We * g_pre) @ norm(x) + (be + We @ b_pre)
    #   conv_out(ln_post(h))     = (Wc * g_post) @ norm(h) + (bc + Wc @ b_post)
    wc2d = w_conv.reshape(Ct, Cw)
    we_f = (w_embed * g_pre[None, :]).astype(jnp.bfloat16)              # (Cw, Ct)
    be_f = (b_embed + jnp.dot(w_embed, b_pre, precision=hi)).astype(jnp.float32)
    wc_f = (wc2d * g_post[None, :]).astype(jnp.bfloat16)                # (Ct, Cw)
    bc_f = (b_conv + jnp.dot(wc2d, b_post, precision=hi)).astype(jnp.float32)

    # Channel-major token stream: free reshapes, no HBM transpose anywhere.
    x_cm = x_nchw.reshape(B, Ct, HW)
    io_bytes = x_nchw.dtype.itemsize

    cap = _vmem_capacity_bytes()
    tT = _pick_token_tile(HW, Ct, Cw, io_bytes, budget=int(0.55 * cap))
    # Keep total parallel step count even so both v7x TensorCores stay busy.
    if (B * (HW // tT)) % 2 == 1 and tT % 256 == 0:
        tT //= 2
    grid = (B, HW // tT)

    # Generation-safe VMEM limit: actual need + headroom, clamped to 0.75x of
    # physical per-core VMEM (48 MiB on v7x, 96 MiB on v5e/v6e).
    vmem_limit = int(min(_tile_bytes(tT, Ct, Cw, io_bytes) + (4 << 20),
                         int(0.75 * cap)))
    vmem_limit = max(vmem_limit, 16 << 20)

    out_cm = pl.pallas_call(
        _vit_enc_kernel,
        out_shape=jax.ShapeDtypeStruct((B, Ct, HW), x_nchw.dtype),
        grid_spec=pltpu.PrefetchScalarGridSpec(
            num_scalar_prefetch=0,
            grid=grid,
            in_specs=[
                pl.BlockSpec((None, Ct, tT), lambda b, t: (b, 0, t)),  # x
                pl.BlockSpec((Cw, Ct), lambda b, t: (0, 0)),           # We' bf16
                pl.BlockSpec((Cw, 1), lambda b, t: (0, 0)),            # be'
                pl.BlockSpec((Ct, Cw), lambda b, t: (0, 0)),           # Wc' bf16
                pl.BlockSpec((Ct, 1), lambda b, t: (0, 0)),            # bc'
            ],
            out_specs=pl.BlockSpec((None, Ct, tT), lambda b, t: (b, 0, t)),
        ),
        compiler_params=pltpu.CompilerParams(
            dimension_semantics=("parallel", "parallel"),
            vmem_limit_bytes=vmem_limit),
    )(x_cm, we_f, be_f.reshape(Cw, 1), wc_f, bc_f.reshape(Ct, 1))

    return out_cm.reshape(B, Ct, H, W)


def _reference(x, w_embed, b_embed, g_pre, b_pre, g_post, b_post,
               w_conv, b_conv):
    """Pure-JAX mirror of the PyTorch forward (transformer stack skipped,
    matching the kernel's TODO); full-precision f32."""
    B, Ct, H, W = x.shape
    Cw = w_embed.shape[0]
    t = jnp.transpose(x.reshape(B, Ct, H * W), (2, 0, 1))     # (HW, B, Ct)
    mu = t.mean(-1, keepdims=True)
    var = ((t - mu) ** 2).mean(-1, keepdims=True)
    tn = (t - mu) / jnp.sqrt(var + LN_EPS) * g_pre + b_pre
    h = jnp.einsum("sbc,dc->sbd", tn, w_embed,
                   precision=jax.lax.Precision.HIGHEST) + b_embed
    mu2 = h.mean(-1, keepdims=True)
    var2 = ((h - mu2) ** 2).mean(-1, keepdims=True)
    hn = (h - mu2) / jnp.sqrt(var2 + LN_EPS) * g_post + b_post
    out = jnp.einsum("sbd,cd->sbc", hn, w_conv.reshape(Ct, Cw),
                     precision=jax.lax.Precision.HIGHEST) + b_conv
    return jnp.transpose(out, (1, 2, 0)).reshape(B, Ct, H, W)


if __name__ == "__main__":
    # Small 'tiny'-style config: image_size=128, patch_size=16 -> grid_size=8;
    # token_size=128; width=256; batch=2.
    B, Ct, Cw, G = 2, 128, 256, 8

    key = jax.random.PRNGKey(0)
    ks = jax.random.split(key, 8)
    x = jax.random.normal(ks[0], (B, Ct, G, G), dtype=jnp.float32)
    w_embed = 0.05 * jax.random.normal(ks[1], (Cw, Ct), dtype=jnp.float32)
    b_embed = 0.02 * jax.random.normal(ks[2], (Cw,), dtype=jnp.float32)
    g_pre = 1.0 + 0.1 * jax.random.normal(ks[3], (Ct,), dtype=jnp.float32)
    b_pre = 0.05 * jax.random.normal(ks[4], (Ct,), dtype=jnp.float32)
    g_post = 1.0 + 0.1 * jax.random.normal(ks[5], (Cw,), dtype=jnp.float32)
    b_post = 0.1 * jax.random.normal(ks[6], (Cw,), dtype=jnp.float32)
    w_conv = 0.05 * jax.random.normal(ks[7], (Ct, Cw, 1, 1), dtype=jnp.float32)
    b_conv = 0.02 * jnp.ones((Ct,), dtype=jnp.float32)

    out = vit_encoder_2d(x, w_embed, b_embed, g_pre, b_pre,
                         g_post, b_post, w_conv, b_conv)
    out = jax.block_until_ready(out)

    ref = _reference(x, w_embed, b_embed, g_pre, b_pre,
                     g_post, b_post, w_conv, b_conv)
    assert out.shape == (B, Ct, G, G)
    # bf16 MXU operands + f32 accumulation -> tolerance loosened vs. the
    # Precision.HIGHEST f32 reference (LN statistics remain f32 in both).
    max_err = float(jnp.max(jnp.abs(out - ref)))
    assert jnp.allclose(out, ref, atol=5e-2, rtol=5e-2), f"max err {max_err}"
    print("KERNEL_OK")
</pallas_src>

<mosaic_0001>
module attributes {stable_mosaic.version = 11 : i64} {
  func.func @_vit_enc_kernel(%arg0: i32, %arg1: i32, %arg2: memref<1x128x64xf32, #tpu.memory_space<vmem>>, %arg3: memref<256x128xbf16, #tpu.memory_space<vmem>>, %arg4: memref<256x1xf32, #tpu.memory_space<vmem>>, %arg5: memref<128x256xbf16, #tpu.memory_space<vmem>>, %arg6: memref<128x1xf32, #tpu.memory_space<vmem>>, %arg7: memref<1x128x64xf32, #tpu.memory_space<vmem>>) attributes {dimension_semantics = [#tpu.dimension_semantics<parallel>, #tpu.dimension_semantics<parallel>], iteration_bounds = array<i64: 2, 1>, scalar_prefetch = 0 : i64, scratch_operands = 0 : i64, tpu.core_type = #tpu.core_type<tc>, window_params = [{transform_indices = @transform_0, window_bounds = array<i64: 1, 128, 64>}, {pipeline_mode = #tpu.pipeline_mode<synchronous>, transform_indices = @transform_1, window_bounds = array<i64: 256, 128>}, {pipeline_mode = #tpu.pipeline_mode<synchronous>, transform_indices = @transform_2, window_bounds = array<i64: 256, 1>}, {pipeline_mode = #tpu.pipeline_mode<synchronous>, transform_indices = @transform_3, window_bounds = array<i64: 128, 256>}, {pipeline_mode = #tpu.pipeline_mode<synchronous>, transform_indices = @transform_4, window_bounds = array<i64: 128, 1>}, {transform_indices = @transform_5, window_bounds = array<i64: 1, 128, 64>}]} {
    %c0 = arith.constant 0 : index
    %c0_0 = arith.constant 0 : index
    %c0_1 = arith.constant 0 : index
    %0 = vector.load %arg2[%c0, %c0_0, %c0_1] : memref<1x128x64xf32, #tpu.memory_space<vmem>>, vector<1x128x64xf32>
    %1 = vector.shape_cast %0 : vector<1x128x64xf32> to vector<128x64xf32>
    %cst = arith.constant dense<0.000000e+00> : vector<64xf32>
    %2 = vector.multi_reduction <add>, %1, %cst [0] : vector<128x64xf32> to vector<64xf32>
    %3 = vector.shape_cast %2 : vector<64xf32> to vector<1x64xf32>
    %cst_2 = arith.constant 1.280000e+02 : f32
    %4 = vector.broadcast %cst_2 : f32 to vector<1x64xf32>
    %5 = arith.divf %3, %4 : vector<1x64xf32>
    %6 = vector.broadcast %5 : vector<1x64xf32> to vector<128x64xf32>
    %7 = arith.subf %1, %6 : vector<128x64xf32>
    %8 = arith.mulf %7, %7 : vector<128x64xf32>
    %cst_3 = arith.constant dense<0.000000e+00> : vector<64xf32>
    %9 = vector.multi_reduction <add>, %8, %cst_3 [0] : vector<128x64xf32> to vector<64xf32>
    %10 = vector.shape_cast %9 : vector<64xf32> to vector<1x64xf32>
    %cst_4 = arith.constant 1.280000e+02 : f32
    %11 = vector.broadcast %cst_4 : f32 to vector<1x64xf32>
    %12 = arith.divf %10, %11 : vector<1x64xf32>
    %cst_5 = arith.constant 9.99999974E-6 : f32
    %13 = vector.broadcast %cst_5 : f32 to vector<1x64xf32>
    %14 = arith.addf %12, %13 : vector<1x64xf32>
    %15 = math.rsqrt %14 : vector<1x64xf32>
    %16 = vector.broadcast %15 : vector<1x64xf32> to vector<128x64xf32>
    %17 = arith.mulf %7, %16 : vector<128x64xf32>
    %c0_6 = arith.constant 0 : index
    %c0_7 = arith.constant 0 : index
    %18 = vector.load %arg3[%c0_6, %c0_7] : memref<256x128xbf16, #tpu.memory_space<vmem>>, vector<256x128xbf16>
    %19 = arith.truncf %17 : vector<128x64xf32> to vector<128x64xbf16>
    %cst_8 = arith.constant dense<0.000000e+00> : vector<256x64xf32>
    %20 = tpu.matmul %18, %19, %cst_8 {dimension_numbers = #tpu.dot_dimension_numbers<[1], [0], [0], [1], [0, 0, 1, 1], [], []>} : vector<256x128xbf16>, vector<128x64xbf16>, vector<256x64xf32> -> vector<256x64xf32>
    %c0_9 = arith.constant 0 : index
    %c0_10 = arith.constant 0 : index
    %21 = vector.load %arg4[%c0_9, %c0_10] : memref<256x1xf32, #tpu.memory_space<vmem>>, vector<256x1xf32>
    %22 = vector.broadcast %21 : vector<256x1xf32> to vector<256x64xf32>
    %23 = arith.addf %20, %22 : vector<256x64xf32>
    %cst_11 = arith.constant dense<0.000000e+00> : vector<64xf32>
    %24 = vector.multi_reduction <add>, %23, %cst_11 [0] : vector<256x64xf32> to vector<64xf32>
    %25 = vector.shape_cast %24 : vector<64xf32> to vector<1x64xf32>
    %cst_12 = arith.constant 2.560000e+02 : f32
    %26 = vector.broadcast %cst_12 : f32 to vector<1x64xf32>
    %27 = arith.divf %25, %26 : vector<1x64xf32>
    %28 = vector.broadcast %27 : vector<1x64xf32> to vector<256x64xf32>
    %29 = arith.subf %23, %28 : vector<256x64xf32>
    %30 = arith.mulf %29, %29 : vector<256x64xf32>
    %cst_13 = arith.constant dense<0.000000e+00> : vector<64xf32>
    %31 = vector.multi_reduction <add>, %30, %cst_13 [0] : vector<256x64xf32> to vector<64xf32>
    %32 = vector.shape_cast %31 : vector<64xf32> to vector<1x64xf32>
    %cst_14 = arith.constant 2.560000e+02 : f32
    %33 = vector.broadcast %cst_14 : f32 to vector<1x64xf32>
    %34 = arith.divf %32, %33 : vector<1x64xf32>
    %cst_15 = arith.constant 9.99999974E-6 : f32
    %35 = vector.broadcast %cst_15 : f32 to vector<1x64xf32>
    %36 = arith.addf %34, %35 : vector<1x64xf32>
    %37 = math.rsqrt %36 : vector<1x64xf32>
    %38 = vector.broadcast %37 : vector<1x64xf32> to vector<256x64xf32>
    %39 = arith.mulf %29, %38 : vector<256x64xf32>
    %c0_16 = arith.constant 0 : index
    %c0_17 = arith.constant 0 : index
    %40 = vector.load %arg5[%c0_16, %c0_17] : memref<128x256xbf16, #tpu.memory_space<vmem>>, vector<128x256xbf16>
    %41 = arith.truncf %39 : vector<256x64xf32> to vector<256x64xbf16>
    %cst_18 = arith.constant dense<0.000000e+00> : vector<128x64xf32>
    %42 = tpu.matmul %40, %41, %cst_18 {dimension_numbers = #tpu.dot_dimension_numbers<[1], [0], [0], [1], [0, 0, 1, 1], [], []>} : vector<128x256xbf16>, vector<256x64xbf16>, vector<128x64xf32> -> vector<128x64xf32>
    %c0_19 = arith.constant 0 : index
    %c0_20 = arith.constant 0 : index
    %43 = vector.load %arg6[%c0_19, %c0_20] : memref<128x1xf32, #tpu.memory_space<vmem>>, vector<128x1xf32>
    %44 = vector.broadcast %43 : vector<128x1xf32> to vector<128x64xf32>
    %45 = arith.addf %42, %44 : vector<128x64xf32>
    %c0_21 = arith.constant 0 : index
    %c0_22 = arith.constant 0 : index
    %c0_23 = arith.constant 0 : index
    %46 = vector.load %arg7[%c0_21, %c0_22, %c0_23] : memref<1x128x64xf32, #tpu.memory_space<vmem>>, vector<1x128x64xf32>
    %47 = vector.shape_cast %46 : vector<1x128x64xf32> to vector<128x64xf32>
    %48 = vector.shape_cast %45 : vector<128x64xf32> to vector<1x128x64xf32>
    tpu.vector_store %arg7[%c0_21, %c0_22, %c0_23], %48 {strides = array<i32>} : memref<1x128x64xf32, #tpu.memory_space<vmem>>, vector<1x128x64xf32>,
    return
  }
  func.func @transform_0(%arg0: i32, %arg1: i32) -> (i32, i32, i32) {
    %c0_i32 = arith.constant 0 : i32
    %c0_i32_0 = arith.constant 0 : i32
    return %arg0, %c0_i32, %arg1 : i32, i32, i32
  }
  func.func @transform_1(%arg0: i32, %arg1: i32) -> (i32, i32) {
    %c0_i32 = arith.constant 0 : i32
    %c0_i32_0 = arith.constant 0 : i32
    %c0_i32_1 = arith.constant 0 : i32
    return %c0_i32, %c0_i32_0 : i32, i32
  }
  func.func @transform_2(%arg0: i32, %arg1: i32) -> (i32, i32) {
    %c0_i32 = arith.constant 0 : i32
    %c0_i32_0 = arith.constant 0 : i32
    %c0_i32_1 = arith.constant 0 : i32
    return %c0_i32, %c0_i32_0 : i32, i32
  }
  func.func @transform_3(%arg0: i32, %arg1: i32) -> (i32, i32) {
    %c0_i32 = arith.constant 0 : i32
    %c0_i32_0 = arith.constant 0 : i32
    %c0_i32_1 = arith.constant 0 : i32
    return %c0_i32, %c0_i32_0 : i32, i32
  }
  func.func @transform_4(%arg0: i32, %arg1: i32) -> (i32, i32) {
    %c0_i32 = arith.constant 0 : i32
    %c0_i32_0 = arith.constant 0 : i32
    %c0_i32_1 = arith.constant 0 : i32
    return %c0_i32, %c0_i32_0 : i32, i32
  }
  func.func @transform_5(%arg0: i32, %arg1: i32) -> (i32, i32, i32) {
    %c0_i32 = arith.constant 0 : i32
    %c0_i32_0 = arith.constant 0 : i32
    return %arg0, %c0_i32, %arg1 : i32, i32, i32
  }
}

</mosaic_0001>

<llo_original>
// kernel: vit_encoder_2d.1
$region0: #{vit_encoder_2d.1}
  #allocation0 [shape = 'u32[]', space=smem, size = 0x4, offset = 0x4, fixed_abs, tag = 'smem constant byte address 0x4 - core index']
  #allocation1 [shape = 'u32[144,128]{1,0:T(1,128)}', space=vmem, size = 0x12000, scoped, tag = 'internal scratch']
  %s0 = inlined_call_operand.vmem [shape: f32[2,128,64], index: 0, kind: input, shape index: {}]
  %s1 = inlined_call_operand.vmem [shape: bf16[256,128], index: 1, kind: input, shape index: {}]
  %s2 = inlined_call_operand.vmem [shape: f32[256,1], index: 2, kind: input, shape index: {}]
  %s3 = inlined_call_operand.vmem [shape: bf16[128,256], index: 3, kind: input, shape index: {}]
  %s4 = inlined_call_operand.vmem [shape: f32[128,1], index: 4, kind: input, shape index: {}]
  %s5 = inlined_call_operand.vmem [shape: f32[2,128,64], index: 5, kind: output, shape index: {}]
  %s6 = sld [smem:[#allocation0]]
  $region53: #{vit_encoder_2d.1} parent=0
    _
  %s8 = ssub.s32 1, %s6
  %s9 = scalar_select 0, %s8, %s6
  loop: start=0, step=1, limit=4
  $region2: #{vit_encoder_2d.1} parent=0 // loop_pre_header
    _
  $region3: #{vit_encoder_2d.1} parent=0 // loop_header
    %s11 = sphi 0, %s15
    %p12 = scmp.ge.s32.totalorder %s11, 4
    %s18 = sphi 0, %s30
    %s19 = sphi 0, %s26
    %s20 = sphi 0, %s18
    %s21 = sphi 0, %s19
    %s22 = sphi 0, %s20
    %s23 = sphi 0, %s21
    %s35 = sphi 0, %s37
    %s38 = sphi 0, %s35
    %s39 = sphi 0, %s38
    %s55 = sphi 0, %s39
    %s59 = sphi 0, %s59
    %s61 = sphi 0, %s59
    %s62 = sphi 0, %s61
    %s76 = sphi 0, %s62
    %s80 = sphi 0, %s80
    %s82 = sphi 0, %s80
    %s83 = sphi 0, %s82
    %s97 = sphi 0, %s83
    %s101 = sphi 0, %s101
    %s103 = sphi 0, %s101
    %s104 = sphi 0, %s103
    %s118 = sphi 0, %s104
    %s122 = sphi 0, %s122
    %s124 = sphi 0, %s122
    %s125 = sphi 0, %s124
    %s139 = sphi 0, %s125
    %s147 = sphi 0, %s149
    %s150 = sphi 0, %s147
    %s151 = sphi 0, %s150
    %s167 = sphi 0, %s151
  $region4: #{vit_encoder_2d.1} parent=0 // loop_header_branch
    %14 = sbr.rel (%p12) target = $region8
  $region5: #{vit_encoder_2d.1} parent=0 // loop_body
    %s16 = ssub.s32 %s11, 1
    %s17 = ssub.s32 %s11, 2
    %s24 = sadd.s32 1, %s19
    %p25 = scmp.ge.s32.totalorder %s24, 1
    %s26 = scalar_select %p25, 0, %s24
    %s27 = sadd.s32 1, %s18
    %s28 = scalar_select %p25, %s27, %s18
    %p29 = scmp.ge.s32.totalorder %s28, 2
    %s30 = scalar_select %p29, 0, %s28
    %s31 = ssub.s32 %s18, %s30
    %s32 = ssub.s32 %s19, %s26
    %s33 = sor.u32 %s31, %s32
    %p34 = scmp.eq.s32.totalorder %s33, 0
    %s36 = sadd.s32 %s35, 1
    %s37 = scalar_select %p34, %s35, %s36
    %p40 = pneg %p34
    %p41 = scmp.eq.s32.totalorder %s11, 1
    %p42 = por %p40, %p41
    %p43 = scmp.ne.s32.totalorder %s35, %s38
    %p44 = scmp.eq.s32.totalorder %s11, 0
    %p45 = por %p43, %p44
    %p46 = scmp.ne.s32.totalorder %s35, %s38
    %p47 = scmp.eq.s32.totalorder %s16, 1
    %p48 = por %p46, %p47
    %p49 = scmp.ne.s32.totalorder %s38, %s39
    %p50 = scmp.eq.s32.totalorder %s16, 0
    %p51 = por %p49, %p50
    %p52 = scmp.ne.s32.totalorder %s38, %s39
    %p53 = scmp.eq.s32.totalorder %s17, 1
    %p54 = por %p52, %p53
    %p56 = scmp.ne.s32.totalorder %s39, %s55
    %p57 = scmp.eq.s32.totalorder %s17, 0
    %p58 = por %p56, %p57
    %s60 = sadd.s32 %s59, 1
    %p63 = scmp.eq.s32.totalorder %s11, 1
    %p64 = scmp.ne.s32.totalorder %s59, %s61
    %p65 = scmp.eq.s32.totalorder %s11, 0
    %p66 = por %p64, %p65
    %p67 = scmp.ne.s32.totalorder %s59, %s61
    %p68 = scmp.eq.s32.totalorder %s16, 1
    %p69 = por %p67, %p68
    %p70 = scmp.ne.s32.totalorder %s61, %s62
    %p71 = scmp.eq.s32.totalorder %s16, 0
    %p72 = por %p70, %p71
    %p73 = scmp.ne.s32.totalorder %s61, %s62
    %p74 = scmp.eq.s32.totalorder %s17, 1
    %p75 = por %p73, %p74
    %p77 = scmp.ne.s32.totalorder %s62, %s76
    %p78 = scmp.eq.s32.totalorder %s17, 0
    %p79 = por %p77, %p78
    %s81 = sadd.s32 %s80, 1
    %p84 = scmp.eq.s32.totalorder %s11, 1
    %p85 = scmp.ne.s32.totalorder %s80, %s82
    %p86 = scmp.eq.s32.totalorder %s11, 0
    %p87 = por %p85, %p86
    %p88 = scmp.ne.s32.totalorder %s80, %s82
    %p89 = scmp.eq.s32.totalorder %s16, 1
    %p90 = por %p88, %p89
    %p91 = scmp.ne.s32.totalorder %s82, %s83
    %p92 = scmp.eq.s32.totalorder %s16, 0
    %p93 = por %p91, %p92
    %p94 = scmp.ne.s32.totalorder %s82, %s83
    %p95 = scmp.eq.s32.totalorder %s17, 1
    %p96 = por %p94, %p95
    %p98 = scmp.ne.s32.totalorder %s83, %s97
    %p99 = scmp.eq.s32.totalorder %s17, 0
    %p100 = por %p98, %p99
    %s102 = sadd.s32 %s101, 1
    %p105 = scmp.eq.s32.totalorder %s11, 1
    %p106 = scmp.ne.s32.totalorder %s101, %s103
    %p107 = scmp.eq.s32.totalorder %s11, 0
    %p108 = por %p106, %p107
    %p109 = scmp.ne.s32.totalorder %s101, %s103
    %p110 = scmp.eq.s32.totalorder %s16, 1
    %p111 = por %p109, %p110
    %p112 = scmp.ne.s32.totalorder %s103, %s104
    %p113 = scmp.eq.s32.totalorder %s16, 0
    %p114 = por %p112, %p113
    %p115 = scmp.ne.s32.totalorder %s103, %s104
    %p116 = scmp.eq.s32.totalorder %s17, 1
    %p117 = por %p115, %p116
    %p119 = scmp.ne.s32.totalorder %s104, %s118
    %p120 = scmp.eq.s32.totalorder %s17, 0
    %p121 = por %p119, %p120
    %s123 = sadd.s32 %s122, 1
    %p126 = scmp.eq.s32.totalorder %s11, 1
    %p127 = scmp.ne.s32.totalorder %s122, %s124
    %p128 = scmp.eq.s32.totalorder %s11, 0
    %p129 = por %p127, %p128
    %p130 = scmp.ne.s32.totalorder %s122, %s124
    %p131 = scmp.eq.s32.totalorder %s16, 1
    %p132 = por %p130, %p131
    %p133 = scmp.ne.s32.totalorder %s124, %s125
    %p134 = scmp.eq.s32.totalorder %s16, 0
    %p135 = por %p133, %p134
    %p136 = scmp.ne.s32.totalorder %s124, %s125
    %p137 = scmp.eq.s32.totalorder %s17, 1
    %p138 = por %p136, %p137
    %p140 = scmp.ne.s32.totalorder %s125, %s139
    %p141 = scmp.eq.s32.totalorder %s17, 0
    %p142 = por %p140, %p141
    %s143 = ssub.s32 %s18, %s30
    %s144 = ssub.s32 %s19, %s26
    %s145 = sor.u32 %s143, %s144
    %p146 = scmp.eq.s32.totalorder %s145, 0
    %s148 = sadd.s32 %s147, 1
    %s149 = scalar_select %p146, %s147, %s148
    %p152 = pneg %p146
    %p153 = scmp.eq.s32.totalorder %s11, 1
    %p154 = por %p152, %p153
    %p155 = scmp.ne.s32.totalorder %s147, %s150
    %p156 = scmp.eq.s32.totalorder %s11, 0
    %p157 = por %p155, %p156
    %p158 = scmp.ne.s32.totalorder %s147, %s150
    %p159 = scmp.eq.s32.totalorder %s16, 1
    %p160 = por %p158, %p159
    %p161 = scmp.ne.s32.totalorder %s150, %s151
    %p162 = scmp.eq.s32.totalorder %s16, 0
    %p163 = por %p161, %p162
    %p164 = scmp.ne.s32.totalorder %s150, %s151
    %p165 = scmp.eq.s32.totalorder %s17, 1
    %p166 = por %p164, %p165
    %p168 = scmp.ne.s32.totalorder %s151, %s167
    %p169 = scmp.eq.s32.totalorder %s17, 0
    %p170 = por %p168, %p169
    %p171 = scmp.le.s32.totalorder 1, %s11
    %p172 = scmp.lt.s32.totalorder %s11, 3
    %p173 = pnand %p171, %p172
    %p174 = pneg %p173
    // Predicated region
    $region9: #{vit_encoder_2d.1} parent=5 // pred_check
      _
    $region10: #{vit_encoder_2d.1} parent=5 // pred_check_branch
      %176 = sbr.rel (%p173) target = $region12
    $region11: #{vit_encoder_2d.1} parent=5 // pred_region
      %s177 = ssub.s32 %s11, 1
      // Predicated region
      $region13: #{vit_encoder_2d.1} parent=11 // pred_check
        %p178 = pneg %p72
      $region14: #{vit_encoder_2d.1} parent=11 // pred_check_branch
        %180 = sbr.rel (%p178) target = $region16
      $region15: #{vit_encoder_2d.1} parent=11 // pred_region
        _
      $region16: #{vit_encoder_2d.1} parent=11 // pred_fallthru
        _
      // Predicated region
      $region17: #{vit_encoder_2d.1} parent=11 // pred_check
        %p181 = pneg %p93
      $region18: #{vit_encoder_2d.1} parent=11 // pred_check_branch
        %183 = sbr.rel (%p181) target = $region20
      $region19: #{vit_encoder_2d.1} parent=11 // pred_region
        _
      $region20: #{vit_encoder_2d.1} parent=11 // pred_fallthru
        _
      // Predicated region
      $region21: #{vit_encoder_2d.1} parent=11 // pred_check
        %p184 = pneg %p114
      $region22: #{vit_encoder_2d.1} parent=11 // pred_check_branch
        %186 = sbr.rel (%p184) target = $region24
      $region23: #{vit_encoder_2d.1} parent=11 // pred_region
        _
      $region24: #{vit_encoder_2d.1} parent=11 // pred_fallthru
        _
      // Predicated region
      $region25: #{vit_encoder_2d.1} parent=11 // pred_check
        %p187 = pneg %p135
      $region26: #{vit_encoder_2d.1} parent=11 // pred_check_branch
        %189 = sbr.rel (%p187) target = $region28
      $region27: #{vit_encoder_2d.1} parent=11 // pred_region
        _
      $region28: #{vit_encoder_2d.1} parent=11 // pred_fallthru
        _
    $region12: #{vit_encoder_2d.1} parent=5 // pred_fallthru
      _
    %p190 = scmp.lt.s32.totalorder %s11, 2
    // Predicated region
    $region29: #{vit_encoder_2d.1} parent=5 // pred_check
      %p191 = pneg %p190
    $region30: #{vit_encoder_2d.1} parent=5 // pred_check_branch
      %193 = sbr.rel (%p191) target = $region32
    $region31: #{vit_encoder_2d.1} parent=5 // pred_region
      // Predicated region
      $region33: #{vit_encoder_2d.1} parent=31 // pred_check
        %p194 = pneg %p45
      $region34: #{vit_encoder_2d.1} parent=31 // pred_check_branch
        %196 = sbr.rel (%p194) target = $region36
      $region35: #{vit_encoder_2d.1} parent=31 // pred_region
        %p197 = scmp.lt.s32.totalorder %s18, 1
        %s198 = scalar_select %p197, %s18, 1
        %p199 = scmp.lt.s32.totalorder %s19, 0
        %s200 = scalar_select %p199, %s19, 0
        %s201 = smul.addr %s198, 16
        %s202 = sadd.s32 %s200, %s201
        %s203 = smul.addr %s202, 8
        %s204 = scalar_lea.vmem %s0, %s203
      $region36: #{vit_encoder_2d.1} parent=31 // pred_fallthru
        _
    $region32: #{vit_encoder_2d.1} parent=5 // pred_fallthru
      _
    %p205 = scmp.le.s32.totalorder 1, %s11
    %p206 = scmp.lt.s32.totalorder %s11, 3
    %p207 = pnand %p205, %p206
    %p208 = pneg %p207
    // Predicated region
    $region37: #{vit_encoder_2d.1} parent=5 // pred_check
      _
    $region38: #{vit_encoder_2d.1} parent=5 // pred_check_branch
      %210 = sbr.rel (%p207) target = $region40
    $region39: #{vit_encoder_2d.1} parent=5 // pred_region
      %s211 = ssub.s32 %s11, 1
      %p212 = scmp.lt.s32.totalorder %s20, 1
      %s213 = scalar_select %p212, %s20, 1
      %p214 = scmp.lt.s32.totalorder %s21, 0
      %s215 = scalar_select %p214, %s21, 0
      %s216 = smul.addr %s213, 16
      %s217 = sadd.s32 %s215, %s216
      %s218 = smul.addr %s217, 8
      %s219 = scalar_lea.vmem %s0, %s218
      %p220 = pneg %p51
      %p221 = pneg %p48
      %p222 = pneg %p72
      %p223 = pneg %p69
      %p224 = pneg %p93
      %p225 = pneg %p90
      %p226 = pneg %p114
      %p227 = pneg %p111
      %p228 = pneg %p135
      %p229 = pneg %p132
      %p230 = pneg %p163
      %p231 = pneg %p160
      %p232 = scmp.lt.s32.totalorder %s20, 1
      %s233 = scalar_select %p232, %s20, 1
      %p234 = scmp.lt.s32.totalorder %s21, 0
      %s235 = scalar_select %p234, %s21, 0
      %s236 = smul.addr %s233, 16
      %s237 = sadd.s32 %s235, %s236
      %s238 = smul.addr %s237, 8
      %s239 = scalar_lea.vmem %s5, %s238
      %p240 = scmp.lt.s32.totalorder %s20, 1
      %s241 = scalar_select %p240, %s20, 1
      %p242 = scmp.lt.s32.totalorder %s21, 0
      %s243 = scalar_select %p242, %s21, 0
      %s244 = smul.addr %s241, 16
      %s245 = sadd.s32 %s243, %s244
      %s246 = smul.addr %s245, 8
      %s247 = scalar_lea.vmem %s0, %s246
      %p248 = scmp.lt.s32.totalorder %s20, 1
      %s249 = scalar_select %p248, %s20, 1
      %p250 = scmp.lt.s32.totalorder %s21, 0
      %s251 = scalar_select %p250, %s21, 0
      %s252 = smul.addr %s249, 16
      %s253 = sadd.s32 %s251, %s252
      %s254 = smul.addr %s253, 8
      %s255 = scalar_lea.vmem %s5, %s254
      %v257 = vld [vmem:[%s247] sm:$0xff]
      %v258 = vld [vmem:[%s247 + $0x8] sm:$0xff]
      %v259 = vld [vmem:[%s247 + $0x10] sm:$0xff]
      %v260 = vld [vmem:[%s247 + $0x18] sm:$0xff]
      %v261 = vld [vmem:[%s247 + $0x20] sm:$0xff]
      %v262 = vld [vmem:[%s247 + $0x28] sm:$0xff]
      %v263 = vld [vmem:[%s247 + $0x30] sm:$0xff]
      %v264 = vld [vmem:[%s247 + $0x38] sm:$0xff]
      %v265 = vld [vmem:[%s247 + $0x40] sm:$0xff]
      %v266 = vld [vmem:[%s247 + $0x48] sm:$0xff]
      %v267 = vld [vmem:[%s247 + $0x50] sm:$0xff]
      %v268 = vld [vmem:[%s247 + $0x58] sm:$0xff]
      %v269 = vld [vmem:[%s247 + $0x60] sm:$0xff]
      %v270 = vld [vmem:[%s247 + $0x68] sm:$0xff]
      %v271 = vld [vmem:[%s247 + $0x70] sm:$0xff]
      %v272 = vld [vmem:[%s247 + $0x78] sm:$0xff]
      %vm273 = vcmask 523264
      %v274 = vsel %vm273, %v257, 0.0
      %v275 = vsel %vm273, %v258, 0.0
      %v276 = vadd.f32 %v274, %v275
      %v277 = vsel %vm273, %v259, 0.0
      %v278 = vadd.f32 %v276, %v277
      %v279 = vsel %vm273, %v260, 0.0
      %v280 = vadd.f32 %v278, %v279
      %v281 = vsel %vm273, %v261, 0.0
      %v282 = vadd.f32 %v280, %v281
      %v283 = vsel %vm273, %v262, 0.0
      %v284 = vadd.f32 %v282, %v283
      %v285 = vsel %vm273, %v263, 0.0
      %v286 = vadd.f32 %v284, %v285
      %v287 = vsel %vm273, %v264, 0.0
      %v288 = vadd.f32 %v286, %v287
      %v289 = vsel %vm273, %v265, 0.0
      %v290 = vadd.f32 %v288, %v289
      %v291 = vsel %vm273, %v266, 0.0
      %v292 = vadd.f32 %v290, %v291
      %v293 = vsel %vm273, %v267, 0.0
      %v294 = vadd.f32 %v292, %v293
      %v295 = vsel %vm273, %v268, 0.0
      %v296 = vadd.f32 %v294, %v295
      %v297 = vsel %vm273, %v269, 0.0
      %v298 = vadd.f32 %v296, %v297
      %v299 = vsel %vm273, %v270, 0.0
      %v300 = vadd.f32 %v298, %v299
      %v301 = vsel %vm273, %v271, 0.0
      %v302 = vadd.f32 %v300, %v301
      %v303 = vsel %vm273, %v272, 0.0
      %v304 = vadd.f32 %v302, %v303
      %v305 = vrot.slane %v304, 4
      %v306 = vadd.f32 %v304, %v305
      %v307 = vrot.slane %v306, 2
      %v308 = vadd.f32 %v306, %v307
      %v309 = vrot.slane %v308, 1
      %v310 = vadd.f32 %v308, %v309
      %v311 = vrcp.pop 128.0
      %v312 = vmul.f32 %v310, %v311
      %v313 = vsub.f32 %v257, %v312
      %v314 = vsub.f32 %v258, %v312
      %v315 = vsub.f32 %v259, %v312
      %v316 = vsub.f32 %v260, %v312
      %v317 = vsub.f32 %v261, %v312
      %v318 = vsub.f32 %v262, %v312
      %v319 = vsub.f32 %v263, %v312
      %v320 = vsub.f32 %v264, %v312
      %v321 = vsub.f32 %v265, %v312
      %v322 = vsub.f32 %v266, %v312
      %v323 = vsub.f32 %v267, %v312
      %v324 = vsub.f32 %v268, %v312
      %v325 = vsub.f32 %v269, %v312
      %v326 = vsub.f32 %v270, %v312
      %v327 = vsub.f32 %v271, %v312
      %v328 = vsub.f32 %v272, %v312
      %v329 = vmul.f32 %v313, %v313
      %v330 = vmul.f32 %v314, %v314
      %v331 = vmul.f32 %v315, %v315
      %v332 = vmul.f32 %v316, %v316
      %v333 = vmul.f32 %v317, %v317
      %v334 = vmul.f32 %v318, %v318
      %v335 = vmul.f32 %v319, %v319
      %v336 = vmul.f32 %v320, %v320
      %v337 = vmul.f32 %v321, %v321
      %v338 = vmul.f32 %v322, %v322
      %v339 = vmul.f32 %v323, %v323
      %v340 = vmul.f32 %v324, %v324
      %v341 = vmul.f32 %v325, %v325
      %v342 = vmul.f32 %v326, %v326
      %v343 = vmul.f32 %v327, %v327
      %v344 = vmul.f32 %v328, %v328
      %v345 = vsel %vm273, %v329, 0.0
      %v346 = vsel %vm273, %v330, 0.0
      %v347 = vadd.f32 %v345, %v346
      %v348 = vsel %vm273, %v331, 0.0
      %v349 = vadd.f32 %v347, %v348
      %v350 = vsel %vm273, %v332, 0.0
      %v351 = vadd.f32 %v349, %v350
      %v352 = vsel %vm273, %v333, 0.0
      %v353 = vadd.f32 %v351, %v352
      %v354 = vsel %vm273, %v334, 0.0
      %v355 = vadd.f32 %v353, %v354
      %v356 = vsel %vm273, %v335, 0.0
      %v357 = vadd.f32 %v355, %v356
      %v358 = vsel %vm273, %v336, 0.0
      %v359 = vadd.f32 %v357, %v358
      %v360 = vsel %vm273, %v337, 0.0
      %v361 = vadd.f32 %v359, %v360
      %v362 = vsel %vm273, %v338, 0.0
      %v363 = vadd.f32 %v361, %v362
      %v364 = vsel %vm273, %v339, 0.0
      %v365 = vadd.f32 %v363, %v364
      %v366 = vsel %vm273, %v340, 0.0
      %v367 = vadd.f32 %v365, %v366
      %v368 = vsel %vm273, %v341, 0.0
      %v369 = vadd.f32 %v367, %v368
      %v370 = vsel %vm273, %v342, 0.0
      %v371 = vadd.f32 %v369, %v370
      %v372 = vsel %vm273, %v343, 0.0
      %v373 = vadd.f32 %v371, %v372
      %v374 = vsel %vm273, %v344, 0.0
      %v375 = vadd.f32 %v373, %v374
      %v376 = vrot.slane %v375, 4
      %v377 = vadd.f32 %v375, %v376
      %v378 = vrot.slane %v377, 2
      %v379 = vadd.f32 %v377, %v378
      %v380 = vrot.slane %v379, 1
      %v381 = vadd.f32 %v379, %v380
      %v382 = vmul.f32 %v381, %v311
      %v383 = vadd.f32 %v382, 1e-05
      %v384 = vrsqrt.pop %v383
      %v385 = vmul.f32 %v313, %v384
      %v386 = vmul.f32 %v314, %v384
      %v387 = vmul.f32 %v315, %v384
      %v388 = vmul.f32 %v316, %v384
      %v389 = vmul.f32 %v317, %v384
      %v390 = vmul.f32 %v318, %v384
      %v391 = vmul.f32 %v319, %v384
      %v392 = vmul.f32 %v320, %v384
      %v393 = vmul.f32 %v321, %v384
      %v394 = vmul.f32 %v322, %v384
      %v395 = vmul.f32 %v323, %v384
      %v396 = vmul.f32 %v324, %v384
      %v397 = vmul.f32 %v325, %v384
      %v398 = vmul.f32 %v326, %v384
      %v399 = vmul.f32 %v327, %v384
      %v400 = vmul.f32 %v328, %v384
      %v401 = vld [vmem:[%s1] sm:$0xf]
      %v402 = vld [vmem:[%s1 + $0x4] sm:$0xf]
      %v403 = vld [vmem:[%s1 + $0x8] sm:$0xf]
      %v404 = vld [vmem:[%s1 + $0xc] sm:$0xf]
      %v405 = vld [vmem:[%s1 + $0x10] sm:$0xf]
      %v406 = vld [vmem:[%s1 + $0x14] sm:$0xf]
      %v407 = vld [vmem:[%s1 + $0x18] sm:$0xf]
      %v408 = vld [vmem:[%s1 + $0x1c] sm:$0xf]
      %v409 = vld [vmem:[%s1 + $0x20] sm:$0xf]
      %v410 = vld [vmem:[%s1 + $0x24] sm:$0xf]
      %v411 = vld [vmem:[%s1 + $0x28] sm:$0xf]
      %v412 = vld [vmem:[%s1 + $0x2c] sm:$0xf]
      %v413 = vld [vmem:[%s1 + $0x30] sm:$0xf]
      %v414 = vld [vmem:[%s1 + $0x34] sm:$0xf]
      %v415 = vld [vmem:[%s1 + $0x38] sm:$0xf]
      %v416 = vld [vmem:[%s1 + $0x3c] sm:$0xf]
      %v417 = vld [vmem:[%s1 + $0x40] sm:$0xf]
      %v418 = vld [vmem:[%s1 + $0x44] sm:$0xf]
      %v419 = vld [vmem:[%s1 + $0x48] sm:$0xf]
      %v420 = vld [vmem:[%s1 + $0x4c] sm:$0xf]
      %v421 = vld [vmem:[%s1 + $0x50] sm:$0xf]
      %v422 = vld [vmem:[%s1 + $0x54] sm:$0xf]
      %v423 = vld [vmem:[%s1 + $0x58] sm:$0xf]
      %v424 = vld [vmem:[%s1 + $0x5c] sm:$0xf]
      %v425 = vld [vmem:[%s1 + $0x60] sm:$0xf]
      %v426 = vld [vmem:[%s1 + $0x64] sm:$0xf]
      %v427 = vld [vmem:[%s1 + $0x68] sm:$0xf]
      %v428 = vld [vmem:[%s1 + $0x6c] sm:$0xf]
      %v429 = vld [vmem:[%s1 + $0x70] sm:$0xf]
      %v430 = vld [vmem:[%s1 + $0x74] sm:$0xf]
      %v431 = vld [vmem:[%s1 + $0x78] sm:$0xf]
      %v432 = vld [vmem:[%s1 + $0x7c] sm:$0xf]
      %v433 = vpack.c.bf16 %v386, %v385
      %v434 = vpack.c.bf16 %v388, %v387
      %v435 = vpack.c.bf16 %v390, %v389
      %v436 = vpack.c.bf16 %v392, %v391
      %v437 = vpack.c.bf16 %v394, %v393
      %v438 = vpack.c.bf16 %v396, %v395
      %v439 = vpack.c.bf16 %v398, %v397
      %v440 = vpack.c.bf16 %v400, %v399
      %v441 = vld [vmem:[%s2] sm:$0xff]
      %v442 = vld [vmem:[%s2 + $0x8] sm:$0xff]
      %v443 = vld [vmem:[%s2 + $0x10] sm:$0xff]
      %v444 = vld [vmem:[%s2 + $0x18] sm:$0xff]
      %v445 = vld [vmem:[%s2 + $0x20] sm:$0xff]
      %v446 = vld [vmem:[%s2 + $0x28] sm:$0xff]
      %v447 = vld [vmem:[%s2 + $0x30] sm:$0xff]
      %v448 = vld [vmem:[%s2 + $0x38] sm:$0xff]
      %v449 = vld [vmem:[%s2 + $0x40] sm:$0xff]
      %v450 = vld [vmem:[%s2 + $0x48] sm:$0xff]
      %v451 = vld [vmem:[%s2 + $0x50] sm:$0xff]
      %v452 = vld [vmem:[%s2 + $0x58] sm:$0xff]
      %v453 = vld [vmem:[%s2 + $0x60] sm:$0xff]
      %v454 = vld [vmem:[%s2 + $0x68] sm:$0xff]
      %v455 = vld [vmem:[%s2 + $0x70] sm:$0xff]
      %v456 = vld [vmem:[%s2 + $0x78] sm:$0xff]
      %v457 = vld [vmem:[%s2 + $0x80] sm:$0xff]
      %v458 = vld [vmem:[%s2 + $0x88] sm:$0xff]
      %v459 = vld [vmem:[%s2 + $0x90] sm:$0xff]
      %v460 = vld [vmem:[%s2 + $0x98] sm:$0xff]
      %v461 = vld [vmem:[%s2 + $0xa0] sm:$0xff]
      %v462 = vld [vmem:[%s2 + $0xa8] sm:$0xff]
      %v463 = vld [vmem:[%s2 + $0xb0] sm:$0xff]
      %v464 = vld [vmem:[%s2 + $0xb8] sm:$0xff]
      %v465 = vld [vmem:[%s2 + $0xc0] sm:$0xff]
      %v466 = vld [vmem:[%s2 + $0xc8] sm:$0xff]
      %v467 = vld [vmem:[%s2 + $0xd0] sm:$0xff]
      %v468 = vld [vmem:[%s2 + $0xd8] sm:$0xff]
      %v469 = vld [vmem:[%s2 + $0xe0] sm:$0xff]
      %v470 = vld [vmem:[%s2 + $0xe8] sm:$0xff]
      %v471 = vld [vmem:[%s2 + $0xf0] sm:$0xff]
      %v472 = vld [vmem:[%s2 + $0xf8] sm:$0xff]
      %474 = vset.pattern.permute.xlu0 0
      %475 = vperm.xlu0 %474, %v441
      %v476 = vpop.permute.xlu0 %475
      %479 = vset.pattern.permute.xlu0 0
      %480 = vperm.xlu0 %479, %v442
      %v481 = vpop.permute.xlu0 %480
      %484 = vset.pattern.permute.xlu0 0
      %485 = vperm.xlu0 %484, %v443
      %v486 = vpop.permute.xlu0 %485
      %489 = vset.pattern.permute.xlu0 0
      %490 = vperm.xlu0 %489, %v444
      %v491 = vpop.permute.xlu0 %490
      %494 = vset.pattern.permute.xlu0 0
      %495 = vperm.xlu0 %494, %v445
      %v496 = vpop.permute.xlu0 %495
      %499 = vset.pattern.permute.xlu0 0
      %500 = vperm.xlu0 %499, %v446
      %v501 = vpop.permute.xlu0 %500
      %504 = vset.pattern.permute.xlu0 0
      %505 = vperm.xlu0 %504, %v447
      %v506 = vpop.permute.xlu0 %505
      %509 = vset.pattern.permute.xlu0 0
      %510 = vperm.xlu0 %509, %v448
      %v511 = vpop.permute.xlu0 %510
      %514 = vset.pattern.permute.xlu0 0
      %515 = vperm.xlu0 %514, %v449
      %v516 = vpop.permute.xlu0 %515
      %519 = vset.pattern.permute.xlu0 0
      %520 = vperm.xlu0 %519, %v450
      %v521 = vpop.permute.xlu0 %520
      %524 = vset.pattern.permute.xlu0 0
      %525 = vperm.xlu0 %524, %v451
      %v526 = vpop.permute.xlu0 %525
      %529 = vset.pattern.permute.xlu0 0
      %530 = vperm.xlu0 %529, %v452
      %v531 = vpop.permute.xlu0 %530
      %534 = vset.pattern.permute.xlu0 0
      %535 = vperm.xlu0 %534, %v453
      %v536 = vpop.permute.xlu0 %535
      %539 = vset.pattern.permute.xlu0 0
      %540 = vperm.xlu0 %539, %v454
      %v541 = vpop.permute.xlu0 %540
      %544 = vset.pattern.permute.xlu0 0
      %545 = vperm.xlu0 %544, %v455
      %v546 = vpop.permute.xlu0 %545
      %549 = vset.pattern.permute.xlu0 0
      %550 = vperm.xlu0 %549, %v456
      %v551 = vpop.permute.xlu0 %550
      %554 = vset.pattern.permute.xlu0 0
      %555 = vperm.xlu0 %554, %v457
      %v556 = vpop.permute.xlu0 %555
      %559 = vset.pattern.permute.xlu0 0
      %560 = vperm.xlu0 %559, %v458
      %v561 = vpop.permute.xlu0 %560
      %564 = vset.pattern.permute.xlu0 0
      %565 = vperm.xlu0 %564, %v459
      %v566 = vpop.permute.xlu0 %565
      %569 = vset.pattern.permute.xlu0 0
      %570 = vperm.xlu0 %569, %v460
      %v571 = vpop.permute.xlu0 %570
      %574 = vset.pattern.permute.xlu0 0
      %575 = vperm.xlu0 %574, %v461
      %v576 = vpop.permute.xlu0 %575
      %579 = vset.pattern.permute.xlu0 0
      %580 = vperm.xlu0 %579, %v462
      %v581 = vpop.permute.xlu0 %580
      %584 = vset.pattern.permute.xlu0 0
      %585 = vperm.xlu0 %584, %v463
      %v586 = vpop.permute.xlu0 %585
      %589 = vset.pattern.permute.xlu0 0
      %590 = vperm.xlu0 %589, %v464
      %v591 = vpop.permute.xlu0 %590
      %594 = vset.pattern.permute.xlu0 0
      %595 = vperm.xlu0 %594, %v465
      %v596 = vpop.permute.xlu0 %595
      %599 = vset.pattern.permute.xlu0 0
      %600 = vperm.xlu0 %599, %v466
      %v601 = vpop.permute.xlu0 %600
      %604 = vset.pattern.permute.xlu0 0
      %605 = vperm.xlu0 %604, %v467
      %v606 = vpop.permute.xlu0 %605
      %609 = vset.pattern.permute.xlu0 0
      %610 = vperm.xlu0 %609, %v468
      %v611 = vpop.permute.xlu0 %610
      %614 = vset.pattern.permute.xlu0 0
      %615 = vperm.xlu0 %614, %v469
      %v616 = vpop.permute.xlu0 %615
      %619 = vset.pattern.permute.xlu0 0
      %620 = vperm.xlu0 %619, %v470
      %v621 = vpop.permute.xlu0 %620
      %624 = vset.pattern.permute.xlu0 0
      %625 = vperm.xlu0 %624, %v471
      %v626 = vpop.permute.xlu0 %625
      %629 = vset.pattern.permute.xlu0 0
      %630 = vperm.xlu0 %629, %v472
      %v631 = vpop.permute.xlu0 %630
      %v665 = vunpack.c.l.b16 %v401
      %v666 = vunpack.c.l.b16 %v402
      %v667 = vunpack.c.l.b16 %v403
      %v668 = vunpack.c.l.b16 %v404
      %v669 = vunpack.c.l.b16 %v405
      %v670 = vunpack.c.l.b16 %v406
      %v671 = vunpack.c.l.b16 %v407
      %v672 = vunpack.c.l.b16 %v408
      %v673 = vunpack.c.l.b16 %v409
      %v674 = vunpack.c.l.b16 %v410
      %v675 = vunpack.c.l.b16 %v411
      %v676 = vunpack.c.l.b16 %v412
      %v677 = vunpack.c.l.b16 %v413
      %v678 = vunpack.c.l.b16 %v414
      %v679 = vunpack.c.l.b16 %v415
      %v680 = vunpack.c.l.b16 %v416
      %v681 = vunpack.c.l.b16 %v417
      %v682 = vunpack.c.l.b16 %v418
      %v683 = vunpack.c.l.b16 %v419
      %v684 = vunpack.c.l.b16 %v420
      %v685 = vunpack.c.l.b16 %v421
      %v686 = vunpack.c.l.b16 %v422
      %v687 = vunpack.c.l.b16 %v423
      %v688 = vunpack.c.l.b16 %v424
      %v689 = vunpack.c.l.b16 %v425
      %v690 = vunpack.c.l.b16 %v426
      %v691 = vunpack.c.l.b16 %v427
      %v692 = vunpack.c.l.b16 %v428
      %v693 = vunpack.c.l.b16 %v429
      %v694 = vunpack.c.l.b16 %v430
      %v695 = vunpack.c.l.b16 %v431
      %v696 = vunpack.c.l.b16 %v432
      %v697 = vpack.c.b16 %v666, %v665
      %v698 = vpack.c.b16 %v668, %v667
      %v699 = vpack.c.b16 %v670, %v669
      %v700 = vpack.c.b16 %v672, %v671
      %v701 = vpack.c.b16 %v674, %v673
      %v702 = vpack.c.b16 %v676, %v675
      %v703 = vpack.c.b16 %v678, %v677
      %v704 = vpack.c.b16 %v680, %v679
      %v705 = vpack.c.b16 %v682, %v681
      %v706 = vpack.c.b16 %v684, %v683
      %v707 = vpack.c.b16 %v686, %v685
      %v708 = vpack.c.b16 %v688, %v687
      %v709 = vpack.c.b16 %v690, %v689
      %v710 = vpack.c.b16 %v692, %v691
      %v711 = vpack.c.b16 %v694, %v693
      %v712 = vpack.c.b16 %v696, %v695
      %729 = vmatprep.subr.bf16.mxu0 0
      %730 = vmatpush1.bf16.msra.mxu0 %v440
      %731 = vmatprep.subr.bf16.mxu0 0
      %732 = vmatpush1.bf16.msra.mxu0 %v439
      %733 = vmatprep.subr.bf16.mxu0 0
      %734 = vmatpush1.bf16.msra.mxu0 %v438
      %735 = vmatprep.subr.bf16.mxu0 0
      %736 = vmatpush1.bf16.msra.mxu0 %v437
      %737 = vmatprep.subr.bf16.mxu0 0
      %738 = vmatpush1.bf16.msra.mxu0 %v436
      %739 = vmatprep.subr.bf16.mxu0 0
      %740 = vmatpush1.bf16.msra.mxu0 %v435
      %741 = vmatprep.subr.bf16.mxu0 0
      %742 = vmatpush1.bf16.msra.mxu0 %v434
      %743 = vmatprep.subr.bf16.mxu0 0
      %744 = vmatpush1.bf16.msra.mxu0 %v433
      %745 = vmatprep.subr.bf16.mxu0 0
      %746 = vmatpush2.bf16.msra.mxu0 0
      %747 = vmatprep.subr.bf16.mxu0 0
      %748 = vmatpush2.bf16.msra.mxu0 0
      %749 = vmatprep.subr.bf16.mxu0 0
      %750 = vmatpush2.bf16.msra.mxu0 0
      %751 = vmatprep.subr.bf16.mxu0 0
      %752 = vmatpush2.bf16.msra.mxu0 0
      %753 = vmatprep.subr.bf16.mxu0 0
      %754 = vmatpush2.bf16.msra.mxu0 0
      %755 = vmatprep.subr.bf16.mxu0 0
      %756 = vmatpush2.bf16.msra.mxu0 0
      %757 = vmatprep.subr.bf16.mxu0 0
      %758 = vmatpush2.bf16.msra.mxu0 0
      %759 = vmatprep.subr.bf16.mxu0 0
      %760 = vmatpush2.bf16.msra.mxu0 0
      %761 = vmatprep.mubr.bf16.mxu0 0
      %762 = vmatmul.mubr.bf16.gmra.mxu0 %v697
      %v763 = vpop.f32.mrf.mxu0
      %v764 = vadd.f32 %v476, %v763
      %v765 = vpop.f32.mrf.mxu0
      %v766 = vpop.f32.mrf.mxu0
      %v767 = vadd.f32 %v481, %v766
      %v768 = vpop.f32.mrf.mxu0
      %769 = vmatprep.mubr.bf16.mxu0 0
      %770 = vmatmul.mubr.bf16.gmra.mxu0 %v698
      %v771 = vpop.f32.mrf.mxu0
      %v772 = vadd.f32 %v486, %v771
      %v773 = vpop.f32.mrf.mxu0
      %v774 = vpop.f32.mrf.mxu0
      %v775 = vadd.f32 %v491, %v774
      %v776 = vpop.f32.mrf.mxu0
      %777 = vmatprep.mubr.bf16.mxu0 0
      %778 = vmatmul.mubr.bf16.gmra.mxu0 %v699
      %v779 = vpop.f32.mrf.mxu0
      %v780 = vadd.f32 %v496, %v779
      %v781 = vpop.f32.mrf.mxu0
      %v782 = vpop.f32.mrf.mxu0
      %v783 = vadd.f32 %v501, %v782
      %v784 = vpop.f32.mrf.mxu0
      %785 = vmatprep.mubr.bf16.mxu0 0
      %786 = vmatmul.mubr.bf16.gmra.mxu0 %v700
      %v787 = vpop.f32.mrf.mxu0
      %v788 = vadd.f32 %v506, %v787
      %v789 = vpop.f32.mrf.mxu0
      %v790 = vpop.f32.mrf.mxu0
      %v791 = vadd.f32 %v511, %v790
      %v792 = vpop.f32.mrf.mxu0
      %793 = vmatprep.mubr.bf16.mxu0 0
      %794 = vmatmul.mubr.bf16.gmra.mxu0 %v701
      %v795 = vpop.f32.mrf.mxu0
      %v796 = vadd.f32 %v516, %v795
      %v797 = vpop.f32.mrf.mxu0
      %v798 = vpop.f32.mrf.mxu0
      %v799 = vadd.f32 %v521, %v798
      %v800 = vpop.f32.mrf.mxu0
      %801 = vmatprep.mubr.bf16.mxu0 0
      %802 = vmatmul.mubr.bf16.gmra.mxu0 %v702
      %v803 = vpop.f32.mrf.mxu0
      %v804 = vadd.f32 %v526, %v803
      %v805 = vpop.f32.mrf.mxu0
      %v806 = vpop.f32.mrf.mxu0
      %v807 = vadd.f32 %v531, %v806
      %v808 = vpop.f32.mrf.mxu0
      %809 = vmatprep.mubr.bf16.mxu0 0
      %810 = vmatmul.mubr.bf16.gmra.mxu0 %v703
      %v811 = vpop.f32.mrf.mxu0
      %v812 = vadd.f32 %v536, %v811
      %v813 = vpop.f32.mrf.mxu0
      %v814 = vpop.f32.mrf.mxu0
      %v815 = vadd.f32 %v541, %v814
      %v816 = vpop.f32.mrf.mxu0
      %817 = vmatprep.mubr.bf16.mxu0 0
      %818 = vmatmul.mubr.bf16.gmra.mxu0 %v704
      %v819 = vpop.f32.mrf.mxu0
      %v820 = vadd.f32 %v546, %v819
      %v821 = vpop.f32.mrf.mxu0
      %v822 = vpop.f32.mrf.mxu0
      %v823 = vadd.f32 %v551, %v822
      %v824 = vpop.f32.mrf.mxu0
      %825 = vmatprep.mubr.bf16.mxu0 0
      %826 = vmatmul.mubr.bf16.gmra.mxu0 %v705
      %v827 = vpop.f32.mrf.mxu0
      %v828 = vadd.f32 %v556, %v827
      %v829 = vpop.f32.mrf.mxu0
      %v830 = vpop.f32.mrf.mxu0
      %v831 = vadd.f32 %v561, %v830
      %v832 = vpop.f32.mrf.mxu0
      %833 = vmatprep.mubr.bf16.mxu0 0
      %834 = vmatmul.mubr.bf16.gmra.mxu0 %v706
      %v835 = vpop.f32.mrf.mxu0
      %v836 = vadd.f32 %v566, %v835
      %v837 = vpop.f32.mrf.mxu0
      %v838 = vpop.f32.mrf.mxu0
      %v839 = vadd.f32 %v571, %v838
      %v840 = vpop.f32.mrf.mxu0
      %841 = vmatprep.mubr.bf16.mxu0 0
      %842 = vmatmul.mubr.bf16.gmra.mxu0 %v707
      %v843 = vpop.f32.mrf.mxu0
      %v844 = vadd.f32 %v576, %v843
      %v845 = vpop.f32.mrf.mxu0
      %v846 = vpop.f32.mrf.mxu0
      %v847 = vadd.f32 %v581, %v846
      %v848 = vpop.f32.mrf.mxu0
      %849 = vmatprep.mubr.bf16.mxu0 0
      %850 = vmatmul.mubr.bf16.gmra.mxu0 %v708
      %v851 = vpop.f32.mrf.mxu0
      %v852 = vadd.f32 %v586, %v851
      %v853 = vpop.f32.mrf.mxu0
      %v854 = vpop.f32.mrf.mxu0
      %v855 = vadd.f32 %v591, %v854
      %v856 = vpop.f32.mrf.mxu0
      %857 = vmatprep.mubr.bf16.mxu0 0
      %858 = vmatmul.mubr.bf16.gmra.mxu0 %v709
      %v859 = vpop.f32.mrf.mxu0
      %v860 = vadd.f32 %v596, %v859
      %v861 = vpop.f32.mrf.mxu0
      %v862 = vpop.f32.mrf.mxu0
      %v863 = vadd.f32 %v601, %v862
      %v864 = vpop.f32.mrf.mxu0
      %865 = vmatprep.mubr.bf16.mxu0 0
      %866 = vmatmul.mubr.bf16.gmra.mxu0 %v710
      %v867 = vpop.f32.mrf.mxu0
      %v868 = vadd.f32 %v606, %v867
      %v869 = vpop.f32.mrf.mxu0
      %v870 = vpop.f32.mrf.mxu0
      %v871 = vadd.f32 %v611, %v870
      %v872 = vpop.f32.mrf.mxu0
      %873 = vmatprep.mubr.bf16.mxu0 0
      %874 = vmatmul.mubr.bf16.gmra.mxu0 %v711
      %v875 = vpop.f32.mrf.mxu0
      %v876 = vadd.f32 %v616, %v875
      %v877 = vpop.f32.mrf.mxu0
      %v878 = vpop.f32.mrf.mxu0
      %v879 = vadd.f32 %v621, %v878
      %v880 = vpop.f32.mrf.mxu0
      %881 = vmatprep.mubr.bf16.mxu0 0
      %882 = vmatmul.mubr.bf16.gmra.mxu0 %v712
      %v883 = vpop.f32.mrf.mxu0
      %v884 = vadd.f32 %v626, %v883
      %v885 = vpop.f32.mrf.mxu0
      %v886 = vpop.f32.mrf.mxu0
      %v887 = vadd.f32 %v631, %v886
      %v888 = vpop.f32.mrf.mxu0
      %889 = vdwg.mxu0
      %v890 = vsel %vm273, %v764, 0.0
      %v891 = vsel %vm273, %v767, 0.0
      %v892 = vadd.f32 %v890, %v891
      %v893 = vsel %vm273, %v772, 0.0
      %v894 = vadd.f32 %v892, %v893
      %v895 = vsel %vm273, %v775, 0.0
      %v896 = vadd.f32 %v894, %v895
      %v897 = vsel %vm273, %v780, 0.0
      %v898 = vadd.f32 %v896, %v897
      %v899 = vsel %vm273, %v783, 0.0
      %v900 = vadd.f32 %v898, %v899
      %v901 = vsel %vm273, %v788, 0.0
      %v902 = vadd.f32 %v900, %v901
      %v903 = vsel %vm273, %v791, 0.0
      %v904 = vadd.f32 %v902, %v903
      %v905 = vsel %vm273, %v796, 0.0
      %v906 = vadd.f32 %v904, %v905
      %v907 = vsel %vm273, %v799, 0.0
      %v908 = vadd.f32 %v906, %v907
      %v909 = vsel %vm273, %v804, 0.0
      %v910 = vadd.f32 %v908, %v909
      %v911 = vsel %vm273, %v807, 0.0
      %v912 = vadd.f32 %v910, %v911
      %v913 = vsel %vm273, %v812, 0.0
      %v914 = vadd.f32 %v912, %v913
      %v915 = vsel %vm273, %v815, 0.0
      %v916 = vadd.f32 %v914, %v915
      %v917 = vsel %vm273, %v820, 0.0
      %v918 = vadd.f32 %v916, %v917
      %v919 = vsel %vm273, %v823, 0.0
      %v920 = vadd.f32 %v918, %v919
      %v921 = vsel %vm273, %v828, 0.0
      %v922 = vadd.f32 %v920, %v921
      %v923 = vsel %vm273, %v831, 0.0
      %v924 = vadd.f32 %v922, %v923
      %v925 = vsel %vm273, %v836, 0.0
      %v926 = vadd.f32 %v924, %v925
      %v927 = vsel %vm273, %v839, 0.0
      %v928 = vadd.f32 %v926, %v927
      %v929 = vsel %vm273, %v844, 0.0
      %v930 = vadd.f32 %v928, %v929
      %v931 = vsel %vm273, %v847, 0.0
      %v932 = vadd.f32 %v930, %v931
      %v933 = vsel %vm273, %v852, 0.0
      %v934 = vadd.f32 %v932, %v933
      %v935 = vsel %vm273, %v855, 0.0
      %v936 = vadd.f32 %v934, %v935
      %v937 = vsel %vm273, %v860, 0.0
      %v938 = vadd.f32 %v936, %v937
      %v939 = vsel %vm273, %v863, 0.0
      %v940 = vadd.f32 %v938, %v939
      %v941 = vsel %vm273, %v868, 0.0
      %v942 = vadd.f32 %v940, %v941
      %v943 = vsel %vm273, %v871, 0.0
      %v944 = vadd.f32 %v942, %v943
      %v945 = vsel %vm273, %v876, 0.0
      %v946 = vadd.f32 %v944, %v945
      %v947 = vsel %vm273, %v879, 0.0
      %v948 = vadd.f32 %v946, %v947
      %v949 = vsel %vm273, %v884, 0.0
      %v950 = vadd.f32 %v948, %v949
      %v951 = vsel %vm273, %v887, 0.0
      %v952 = vadd.f32 %v950, %v951
      %v953 = vrot.slane %v952, 4
      %v954 = vadd.f32 %v952, %v953
      %v955 = vrot.slane %v954, 2
      %v956 = vadd.f32 %v954, %v955
      %v957 = vrot.slane %v956, 1
      %v958 = vadd.f32 %v956, %v957
      %v959 = vrcp.pop 256.0
      %v960 = vmul.f32 %v958, %v959
      %v961 = vsub.f32 %v764, %v960
      %v962 = vsub.f32 %v767, %v960
      %v963 = vsub.f32 %v772, %v960
      %v964 = vsub.f32 %v775, %v960
      %v965 = vsub.f32 %v780, %v960
      %v966 = vsub.f32 %v783, %v960
      %v967 = vsub.f32 %v788, %v960
      %v968 = vsub.f32 %v791, %v960
      %v969 = vsub.f32 %v796, %v960
      %v970 = vsub.f32 %v799, %v960
      %v971 = vsub.f32 %v804, %v960
      %v972 = vsub.f32 %v807, %v960
      %v973 = vsub.f32 %v812, %v960
      %v974 = vsub.f32 %v815, %v960
      %v975 = vsub.f32 %v820, %v960
      %v976 = vsub.f32 %v823, %v960
      %v977 = vsub.f32 %v828, %v960
      %v978 = vsub.f32 %v831, %v960
      %v979 = vsub.f32 %v836, %v960
      %v980 = vsub.f32 %v839, %v960
      %v981 = vsub.f32 %v844, %v960
      %v982 = vsub.f32 %v847, %v960
      %v983 = vsub.f32 %v852, %v960
      %v984 = vsub.f32 %v855, %v960
      %v985 = vsub.f32 %v860, %v960
      %v986 = vsub.f32 %v863, %v960
      %v987 = vsub.f32 %v868, %v960
      %v988 = vsub.f32 %v871, %v960
      %v989 = vsub.f32 %v876, %v960
      %v990 = vsub.f32 %v879, %v960
      %v991 = vsub.f32 %v884, %v960
      %v992 = vsub.f32 %v887, %v960
      %v993 = vmul.f32 %v961, %v961
      %v994 = vmul.f32 %v962, %v962
      %v995 = vmul.f32 %v963, %v963
      %v996 = vmul.f32 %v964, %v964
      %v997 = vmul.f32 %v965, %v965
      %v998 = vmul.f32 %v966, %v966
      %v999 = vmul.f32 %v967, %v967
      %v1000 = vmul.f32 %v968, %v968
      %v1001 = vmul.f32 %v969, %v969
      %v1002 = vmul.f32 %v970, %v970
      %v1003 = vmul.f32 %v971, %v971
      %v1004 = vmul.f32 %v972, %v972
      %v1005 = vmul.f32 %v973, %v973
      %v1006 = vmul.f32 %v974, %v974
      %v1007 = vmul.f32 %v975, %v975
      %v1008 = vmul.f32 %v976, %v976
      %v1009 = vmul.f32 %v977, %v977
      %v1010 = vmul.f32 %v978, %v978
      %v1011 = vmul.f32 %v979, %v979
      %v1012 = vmul.f32 %v980, %v980
      %v1013 = vmul.f32 %v981, %v981
      %v1014 = vmul.f32 %v982, %v982
      %v1015 = vmul.f32 %v983, %v983
      %v1016 = vmul.f32 %v984, %v984
      %v1017 = vmul.f32 %v985, %v985
      %v1018 = vmul.f32 %v986, %v986
      %v1019 = vmul.f32 %v987, %v987
      %v1020 = vmul.f32 %v988, %v988
      %v1021 = vmul.f32 %v989, %v989
      %v1022 = vmul.f32 %v990, %v990
      %v1023 = vmul.f32 %v991, %v991
      %v1024 = vmul.f32 %v992, %v992
      %v1025 = vsel %vm273, %v993, 0.0
      %v1026 = vsel %vm273, %v994, 0.0
      %v1027 = vadd.f32 %v1025, %v1026
      %v1028 = vsel %vm273, %v995, 0.0
      %v1029 = vadd.f32 %v1027, %v1028
      %v1030 = vsel %vm273, %v996, 0.0
      %v1031 = vadd.f32 %v1029, %v1030
      %v1032 = vsel %vm273, %v997, 0.0
      %v1033 = vadd.f32 %v1031, %v1032
      %v1034 = vsel %vm273, %v998, 0.0
      %v1035 = vadd.f32 %v1033, %v1034
      %v1036 = vsel %vm273, %v999, 0.0
      %v1037 = vadd.f32 %v1035, %v1036
      %v1038 = vsel %vm273, %v1000, 0.0
      %v1039 = vadd.f32 %v1037, %v1038
      %v1040 = vsel %vm273, %v1001, 0.0
      %v1041 = vadd.f32 %v1039, %v1040
      %v1042 = vsel %vm273, %v1002, 0.0
      %v1043 = vadd.f32 %v1041, %v1042
      %v1044 = vsel %vm273, %v1003, 0.0
      %v1045 = vadd.f32 %v1043, %v1044
      %v1046 = vsel %vm273, %v1004, 0.0
      %v1047 = vadd.f32 %v1045, %v1046
      %v1048 = vsel %vm273, %v1005, 0.0
      %v1049 = vadd.f32 %v1047, %v1048
      %v1050 = vsel %vm273, %v1006, 0.0
      %v1051 = vadd.f32 %v1049, %v1050
      %v1052 = vsel %vm273, %v1007, 0.0
      %v1053 = vadd.f32 %v1051, %v1052
      %v1054 = vsel %vm273, %v1008, 0.0
      %v1055 = vadd.f32 %v1053, %v1054
      %v1056 = vsel %vm273, %v1009, 0.0
      %v1057 = vadd.f32 %v1055, %v1056
      %v1058 = vsel %vm273, %v1010, 0.0
      %v1059 = vadd.f32 %v1057, %v1058
      %v1060 = vsel %vm273, %v1011, 0.0
      %v1061 = vadd.f32 %v1059, %v1060
      %v1062 = vsel %vm273, %v1012, 0.0
      %v1063 = vadd.f32 %v1061, %v1062
      %v1064 = vsel %vm273, %v1013, 0.0
      %v1065 = vadd.f32 %v1063, %v1064
      %v1066 = vsel %vm273, %v1014, 0.0
      %v1067 = vadd.f32 %v1065, %v1066
      %v1068 = vsel %vm273, %v1015, 0.0
      %v1069 = vadd.f32 %v1067, %v1068
      %v1070 = vsel %vm273, %v1016, 0.0
      %v1071 = vadd.f32 %v1069, %v1070
      %v1072 = vsel %vm273, %v1017, 0.0
      %v1073 = vadd.f32 %v1071, %v1072
      %v1074 = vsel %vm273, %v1018, 0.0
      %v1075 = vadd.f32 %v1073, %v1074
      %v1076 = vsel %vm273, %v1019, 0.0
      %v1077 = vadd.f32 %v1075, %v1076
      %v1078 = vsel %vm273, %v1020, 0.0
      %v1079 = vadd.f32 %v1077, %v1078
      %v1080 = vsel %vm273, %v1021, 0.0
      %v1081 = vadd.f32 %v1079, %v1080
      %v1082 = vsel %vm273, %v1022, 0.0
      %v1083 = vadd.f32 %v1081, %v1082
      %v1084 = vsel %vm273, %v1023, 0.0
      %v1085 = vadd.f32 %v1083, %v1084
      %v1086 = vsel %vm273, %v1024, 0.0
      %v1087 = vadd.f32 %v1085, %v1086
      %v1088 = vrot.slane %v1087, 4
      %v1089 = vadd.f32 %v1087, %v1088
      %v1090 = vrot.slane %v1089, 2
      %v1091 = vadd.f32 %v1089, %v1090
      %v1092 = vrot.slane %v1091, 1
      %v1093 = vadd.f32 %v1091, %v1092
      %v1094 = vmul.f32 %v1093, %v959
      %v1095 = vadd.f32 %v1094, 1e-05
      %v1096 = vrsqrt.pop %v1095
      %v1097 = vmul.f32 %v961, %v1096
      %v1098 = vmul.f32 %v962, %v1096
      %v1099 = vmul.f32 %v963, %v1096
      %v1100 = vmul.f32 %v964, %v1096
      %v1101 = vmul.f32 %v965, %v1096
      %v1102 = vmul.f32 %v966, %v1096
      %v1103 = vmul.f32 %v967, %v1096
      %v1104 = vmul.f32 %v968, %v1096
      %v1105 = vmul.f32 %v969, %v1096
      %v1106 = vmul.f32 %v970, %v1096
      %v1107 = vmul.f32 %v971, %v1096
      %v1108 = vmul.f32 %v972, %v1096
      %v1109 = vmul.f32 %v973, %v1096
      %v1110 = vmul.f32 %v974, %v1096
      %v1111 = vmul.f32 %v975, %v1096
      %v1112 = vmul.f32 %v976, %v1096
      %v1113 = vmul.f32 %v977, %v1096
      %v1114 = vmul.f32 %v978, %v1096
      %v1115 = vmul.f32 %v979, %v1096
      %v1116 = vmul.f32 %v980, %v1096
      %v1117 = vmul.f32 %v981, %v1096
      %v1118 = vmul.f32 %v982, %v1096
      %v1119 = vmul.f32 %v983, %v1096
      %v1120 = vmul.f32 %v984, %v1096
      %v1121 = vmul.f32 %v985, %v1096
      %v1122 = vmul.f32 %v986, %v1096
      %v1123 = vmul.f32 %v987, %v1096
      %v1124 = vmul.f32 %v988, %v1096
      %v1125 = vmul.f32 %v989, %v1096
      %v1126 = vmul.f32 %v990, %v1096
      %v1127 = vmul.f32 %v991, %v1096
      %v1128 = vmul.f32 %v992, %v1096
      %v1129 = vld [vmem:[%s3] sm:$0xff]
      %v1130 = vld [vmem:[%s3 + $0x8] sm:$0xff]
      %v1131 = vld [vmem:[%s3 + $0x10] sm:$0xff]
      %v1132 = vld [vmem:[%s3 + $0x18] sm:$0xff]
      %v1133 = vld [vmem:[%s3 + $0x20] sm:$0xff]
      %v1134 = vld [vmem:[%s3 + $0x28] sm:$0xff]
      %v1135 = vld [vmem:[%s3 + $0x30] sm:$0xff]
      %v1136 = vld [vmem:[%s3 + $0x38] sm:$0xff]
      %v1137 = vld [vmem:[%s3 + $0x40] sm:$0xff]
      %v1138 = vld [vmem:[%s3 + $0x48] sm:$0xff]
      %v1139 = vld [vmem:[%s3 + $0x50] sm:$0xff]
      %v1140 = vld [vmem:[%s3 + $0x58] sm:$0xff]
      %v1141 = vld [vmem:[%s3 + $0x60] sm:$0xff]
      %v1142 = vld [vmem:[%s3 + $0x68] sm:$0xff]
      %v1143 = vld [vmem:[%s3 + $0x70] sm:$0xff]
      %v1144 = vld [vmem:[%s3 + $0x78] sm:$0xff]
      %v1145 = vpack.c.bf16 %v1098, %v1097
      %v1146 = vpack.c.bf16 %v1100, %v1099
      %v1147 = vpack.c.bf16 %v1102, %v1101
      %v1148 = vpack.c.bf16 %v1104, %v1103
      %v1149 = vpack.c.bf16 %v1106, %v1105
      %v1150 = vpack.c.bf16 %v1108, %v1107
      %v1151 = vpack.c.bf16 %v1110, %v1109
      %v1152 = vpack.c.bf16 %v1112, %v1111
      %v1153 = vpack.c.bf16 %v1114, %v1113
      %v1154 = vpack.c.bf16 %v1116, %v1115
      %v1155 = vpack.c.bf16 %v1118, %v1117
      %v1156 = vpack.c.bf16 %v1120, %v1119
      %v1157 = vpack.c.bf16 %v1122, %v1121
      %v1158 = vpack.c.bf16 %v1124, %v1123
      %v1159 = vpack.c.bf16 %v1126, %v1125
      %v1160 = vpack.c.bf16 %v1128, %v1127
      %v1161 = vld [vmem:[%s4] sm:$0xff]
      %v1162 = vld [vmem:[%s4 + $0x8] sm:$0xff]
      %v1163 = vld [vmem:[%s4 + $0x10] sm:$0xff]
      %v1164 = vld [vmem:[%s4 + $0x18] sm:$0xff]
      %v1165 = vld [vmem:[%s4 + $0x20] sm:$0xff]
      %v1166 = vld [vmem:[%s4 + $0x28] sm:$0xff]
      %v1167 = vld [vmem:[%s4 + $0x30] sm:$0xff]
      %v1168 = vld [vmem:[%s4 + $0x38] sm:$0xff]
      %v1169 = vld [vmem:[%s4 + $0x40] sm:$0xff]
      %v1170 = vld [vmem:[%s4 + $0x48] sm:$0xff]
      %v1171 = vld [vmem:[%s4 + $0x50] sm:$0xff]
      %v1172 = vld [vmem:[%s4 + $0x58] sm:$0xff]
      %v1173 = vld [vmem:[%s4 + $0x60] sm:$0xff]
      %v1174 = vld [vmem:[%s4 + $0x68] sm:$0xff]
      %v1175 = vld [vmem:[%s4 + $0x70] sm:$0xff]
      %v1176 = vld [vmem:[%s4 + $0x78] sm:$0xff]
      %1178 = vset.pattern.permute.xlu0 0
      %1179 = vperm.xlu0 %1178, %v1161
      %v1180 = vpop.permute.xlu0 %1179
      %1183 = vset.pattern.permute.xlu0 0
      %1184 = vperm.xlu0 %1183, %v1162
      %v1185 = vpop.permute.xlu0 %1184
      %1188 = vset.pattern.permute.xlu0 0
      %1189 = vperm.xlu0 %1188, %v1163
      %v1190 = vpop.permute.xlu0 %1189
      %1193 = vset.pattern.permute.xlu0 0
      %1194 = vperm.xlu0 %1193, %v1164
      %v1195 = vpop.permute.xlu0 %1194
      %1198 = vset.pattern.permute.xlu0 0
      %1199 = vperm.xlu0 %1198, %v1165
      %v1200 = vpop.permute.xlu0 %1199
      %1203 = vset.pattern.permute.xlu0 0
      %1204 = vperm.xlu0 %1203, %v1166
      %v1205 = vpop.permute.xlu0 %1204
      %1208 = vset.pattern.permute.xlu0 0
      %1209 = vperm.xlu0 %1208, %v1167
      %v1210 = vpop.permute.xlu0 %1209
      %1213 = vset.pattern.permute.xlu0 0
      %1214 = vperm.xlu0 %1213, %v1168
      %v1215 = vpop.permute.xlu0 %1214
      %1218 = vset.pattern.permute.xlu0 0
      %1219 = vperm.xlu0 %1218, %v1169
      %v1220 = vpop.permute.xlu0 %1219
      %1223 = vset.pattern.permute.xlu0 0
      %1224 = vperm.xlu0 %1223, %v1170
      %v1225 = vpop.permute.xlu0 %1224
      %1228 = vset.pattern.permute.xlu0 0
      %1229 = vperm.xlu0 %1228, %v1171
      %v1230 = vpop.permute.xlu0 %1229
      %1233 = vset.pattern.permute.xlu0 0
      %1234 = vperm.xlu0 %1233, %v1172
      %v1235 = vpop.permute.xlu0 %1234
      %1238 = vset.pattern.permute.xlu0 0
      %1239 = vperm.xlu0 %1238, %v1173
      %v1240 = vpop.permute.xlu0 %1239
      %1243 = vset.pattern.permute.xlu0 0
      %1244 = vperm.xlu0 %1243, %v1174
      %v1245 = vpop.permute.xlu0 %1244
      %1248 = vset.pattern.permute.xlu0 0
      %1249 = vperm.xlu0 %1248, %v1175
      %v1250 = vpop.permute.xlu0 %1249
      %1253 = vset.pattern.permute.xlu0 0
      %1254 = vperm.xlu0 %1253, %v1176
      %v1255 = vpop.permute.xlu0 %1254
      %v1273 = vunpack.c.l.b16 %v1129
      %v1274 = vunpack.c.h.b16 %v1129
      %v1275 = vunpack.c.l.b16 %v1130
      %v1276 = vunpack.c.h.b16 %v1130
      %v1277 = vunpack.c.l.b16 %v1131
      %v1278 = vunpack.c.h.b16 %v1131
      %v1279 = vunpack.c.l.b16 %v1132
      %v1280 = vunpack.c.h.b16 %v1132
      %v1281 = vunpack.c.l.b16 %v1133
      %v1282 = vunpack.c.h.b16 %v1133
      %v1283 = vunpack.c.l.b16 %v1134
      %v1284 = vunpack.c.h.b16 %v1134
      %v1285 = vunpack.c.l.b16 %v1135
      %v1286 = vunpack.c.h.b16 %v1135
      %v1287 = vunpack.c.l.b16 %v1136
      %v1288 = vunpack.c.h.b16 %v1136
      %v1289 = vunpack.c.l.b16 %v1137
      %v1290 = vunpack.c.h.b16 %v1137
      %v1291 = vunpack.c.l.b16 %v1138
      %v1292 = vunpack.c.h.b16 %v1138
      %v1293 = vunpack.c.l.b16 %v1139
      %v1294 = vunpack.c.h.b16 %v1139
      %v1295 = vunpack.c.l.b16 %v1140
      %v1296 = vunpack.c.h.b16 %v1140
      %v1297 = vunpack.c.l.b16 %v1141
      %v1298 = vunpack.c.h.b16 %v1141
      %v1299 = vunpack.c.l.b16 %v1142
      %v1300 = vunpack.c.h.b16 %v1142
      %v1301 = vunpack.c.l.b16 %v1143
      %v1302 = vunpack.c.h.b16 %v1143
      %v1303 = vunpack.c.l.b16 %v1144
      %v1304 = vunpack.c.h.b16 %v1144
      %v1305 = vpack.c.b16 %v1275, %v1273
      %v1306 = vpack.c.b16 %v1276, %v1274
      %v1307 = vpack.c.b16 %v1279, %v1277
      %v1308 = vpack.c.b16 %v1280, %v1278
      %v1309 = vpack.c.b16 %v1283, %v1281
      %v1310 = vpack.c.b16 %v1284, %v1282
      %v1311 = vpack.c.b16 %v1287, %v1285
      %v1312 = vpack.c.b16 %v1288, %v1286
      %v1313 = vpack.c.b16 %v1291, %v1289
      %v1314 = vpack.c.b16 %v1292, %v1290
      %v1315 = vpack.c.b16 %v1295, %v1293
      %v1316 = vpack.c.b16 %v1296, %v1294
      %v1317 = vpack.c.b16 %v1299, %v1297
      %v1318 = vpack.c.b16 %v1300, %v1298
      %v1319 = vpack.c.b16 %v1303, %v1301
      %v1320 = vpack.c.b16 %v1304, %v1302
      %1337 = vmatprep.subr.bf16.mxu0 0
      %1338 = vmatpush1.bf16.msra.mxu0 %v1152
      %1339 = vmatprep.subr.bf16.mxu0 0
      %1340 = vmatpush1.bf16.msra.mxu0 %v1151
      %1341 = vmatprep.subr.bf16.mxu0 0
      %1342 = vmatpush1.bf16.msra.mxu0 %v1150
      %1343 = vmatprep.subr.bf16.mxu0 0
      %1344 = vmatpush1.bf16.msra.mxu0 %v1149
      %1345 = vmatprep.subr.bf16.mxu0 0
      %1346 = vmatpush1.bf16.msra.mxu0 %v1148
      %1347 = vmatprep.subr.bf16.mxu0 0
      %1348 = vmatpush1.bf16.msra.mxu0 %v1147
      %1349 = vmatprep.subr.bf16.mxu0 0
      %1350 = vmatpush1.bf16.msra.mxu0 %v1146
      %1351 = vmatprep.subr.bf16.mxu0 0
      %1352 = vmatpush1.bf16.msra.mxu0 %v1145
      %1353 = vmatprep.subr.bf16.mxu0 0
      %1354 = vmatpush2.bf16.msra.mxu0 %v1160
      %1355 = vmatprep.subr.bf16.mxu0 0
      %1356 = vmatpush2.bf16.msra.mxu0 %v1159
      %1357 = vmatprep.subr.bf16.mxu0 0
      %1358 = vmatpush2.bf16.msra.mxu0 %v1158
      %1359 = vmatprep.subr.bf16.mxu0 0
      %1360 = vmatpush2.bf16.msra.mxu0 %v1157
      %1361 = vmatprep.subr.bf16.mxu0 0
      %1362 = vmatpush2.bf16.msra.mxu0 %v1156
      %1363 = vmatprep.subr.bf16.mxu0 0
      %1364 = vmatpush2.bf16.msra.mxu0 %v1155
      %1365 = vmatprep.subr.bf16.mxu0 0
      %1366 = vmatpush2.bf16.msra.mxu0 %v1154
      %1367 = vmatprep.subr.bf16.mxu0 0
      %1368 = vmatpush2.bf16.msra.mxu0 %v1153
      %1369 = vmatprep.mubr.bf16.mxu0 %v1306
      %1370 = vmatmul.mubr.bf16.gmra.mxu0 %v1305
      %v1371 = vpop.f32.mrf.mxu0
      %v1372 = vadd.f32 %v1180, %v1371
      %v1373 = vpop.f32.mrf.mxu0
      %v1374 = vpop.f32.mrf.mxu0
      %v1375 = vadd.f32 %v1185, %v1374
      %v1376 = vpop.f32.mrf.mxu0
      %1377 = vmatprep.mubr.bf16.mxu0 %v1308
      %1378 = vmatmul.mubr.bf16.gmra.mxu0 %v1307
      %v1379 = vpop.f32.mrf.mxu0
      %v1380 = vadd.f32 %v1190, %v1379
      %v1381 = vpop.f32.mrf.mxu0
      %v1382 = vpop.f32.mrf.mxu0
      %v1383 = vadd.f32 %v1195, %v1382
      %v1384 = vpop.f32.mrf.mxu0
      %1385 = vmatprep.mubr.bf16.mxu0 %v1310
      %1386 = vmatmul.mubr.bf16.gmra.mxu0 %v1309
      %v1387 = vpop.f32.mrf.mxu0
      %v1388 = vadd.f32 %v1200, %v1387
      %v1389 = vpop.f32.mrf.mxu0
      %v1390 = vpop.f32.mrf.mxu0
      %v1391 = vadd.f32 %v1205, %v1390
      %v1392 = vpop.f32.mrf.mxu0
      %1393 = vmatprep.mubr.bf16.mxu0 %v1312
      %1394 = vmatmul.mubr.bf16.gmra.mxu0 %v1311
      %v1395 = vpop.f32.mrf.mxu0
      %v1396 = vadd.f32 %v1210, %v1395
      %v1397 = vpop.f32.mrf.mxu0
      %v1398 = vpop.f32.mrf.mxu0
      %v1399 = vadd.f32 %v1215, %v1398
      %v1400 = vpop.f32.mrf.mxu0
      %1401 = vmatprep.mubr.bf16.mxu0 %v1314
      %1402 = vmatmul.mubr.bf16.gmra.mxu0 %v1313
      %v1403 = vpop.f32.mrf.mxu0
      %v1404 = vadd.f32 %v1220, %v1403
      %v1405 = vpop.f32.mrf.mxu0
      %v1406 = vpop.f32.mrf.mxu0
      %v1407 = vadd.f32 %v1225, %v1406
      %v1408 = vpop.f32.mrf.mxu0
      %1409 = vmatprep.mubr.bf16.mxu0 %v1316
      %1410 = vmatmul.mubr.bf16.gmra.mxu0 %v1315
      %v1411 = vpop.f32.mrf.mxu0
      %v1412 = vadd.f32 %v1230, %v1411
      %v1413 = vpop.f32.mrf.mxu0
      %v1414 = vpop.f32.mrf.mxu0
      %v1415 = vadd.f32 %v1235, %v1414
      %v1416 = vpop.f32.mrf.mxu0
      %1417 = vmatprep.mubr.bf16.mxu0 %v1318
      %1418 = vmatmul.mubr.bf16.gmra.mxu0 %v1317
      %v1419 = vpop.f32.mrf.mxu0
      %v1420 = vadd.f32 %v1240, %v1419
      %v1421 = vpop.f32.mrf.mxu0
      %v1422 = vpop.f32.mrf.mxu0
      %v1423 = vadd.f32 %v1245, %v1422
      %v1424 = vpop.f32.mrf.mxu0
      %1425 = vmatprep.mubr.bf16.mxu0 %v1320
      %1426 = vmatmul.mubr.bf16.gmra.mxu0 %v1319
      %v1427 = vpop.f32.mrf.mxu0
      %v1428 = vadd.f32 %v1250, %v1427
      %v1429 = vpop.f32.mrf.mxu0
      %v1430 = vpop.f32.mrf.mxu0
      %v1431 = vadd.f32 %v1255, %v1430
      %v1432 = vpop.f32.mrf.mxu0
      %1433 = vdwg.mxu0
      %1434 = vst.msk [vmem:[%s255] sm:$0xff] %vm273, %v1372
      %1435 = vst.msk [vmem:[%s255 + $0x8] sm:$0xff] %vm273, %v1375
      %1436 = vst.msk [vmem:[%s255 + $0x10] sm:$0xff] %vm273, %v1380
      %1437 = vst.msk [vmem:[%s255 + $0x18] sm:$0xff] %vm273, %v1383
      %1438 = vst.msk [vmem:[%s255 + $0x20] sm:$0xff] %vm273, %v1388
      %1439 = vst.msk [vmem:[%s255 + $0x28] sm:$0xff] %vm273, %v1391
      %1440 = vst.msk [vmem:[%s255 + $0x30] sm:$0xff] %vm273, %v1396
      %1441 = vst.msk [vmem:[%s255 + $0x38] sm:$0xff] %vm273, %v1399
      %1442 = vst.msk [vmem:[%s255 + $0x40] sm:$0xff] %vm273, %v1404
      %1443 = vst.msk [vmem:[%s255 + $0x48] sm:$0xff] %vm273, %v1407
      %1444 = vst.msk [vmem:[%s255 + $0x50] sm:$0xff] %vm273, %v1412
      %1445 = vst.msk [vmem:[%s255 + $0x58] sm:$0xff] %vm273, %v1415
      %1446 = vst.msk [vmem:[%s255 + $0x60] sm:$0xff] %vm273, %v1420
      %1447 = vst.msk [vmem:[%s255 + $0x68] sm:$0xff] %vm273, %v1423
      %1448 = vst.msk [vmem:[%s255 + $0x70] sm:$0xff] %vm273, %v1428
      %1449 = vst.msk [vmem:[%s255 + $0x78] sm:$0xff] %vm273, %v1431
      %p1450 = scmp.lt.s32.totalorder %s20, 1
      %s1451 = scalar_select %p1450, %s20, 1
      %p1452 = scmp.lt.s32.totalorder %s21, 0
      %s1453 = scalar_select %p1452, %s21, 0
      %s1454 = smul.addr %s1451, 16
      %s1455 = sadd.s32 %s1453, %s1454
      %s1456 = smul.addr %s1455, 8
      %s1457 = scalar_lea.vmem %s5, %s1456
      // Predicated region
      $region41: #{vit_encoder_2d.1} parent=39 // pred_check
        %p1458 = pneg %p160
      $region42: #{vit_encoder_2d.1} parent=39 // pred_check_branch
        %1460 = sbr.rel (%p1458) target = $region44
      $region43: #{vit_encoder_2d.1} parent=39 // pred_region
        _
      $region44: #{vit_encoder_2d.1} parent=39 // pred_fallthru
        _
    $region40: #{vit_encoder_2d.1} parent=5 // pred_fallthru
      _
    %p1461 = scmp.le.s32.totalorder 2, %s11
    // Predicated region
    $region45: #{vit_encoder_2d.1} parent=5 // pred_check
      %p1462 = pneg %p1461
    $region46: #{vit_encoder_2d.1} parent=5 // pred_check_branch
      %1464 = sbr.rel (%p1462) target = $region48
    $region47: #{vit_encoder_2d.1} parent=5 // pred_region
      %s1465 = ssub.s32 %s11, 2
      // Predicated region
      $region49: #{vit_encoder_2d.1} parent=47 // pred_check
        %p1466 = pneg %p166
      $region50: #{vit_encoder_2d.1} parent=47 // pred_check_branch
        %1468 = sbr.rel (%p1466) target = $region52
      $region51: #{vit_encoder_2d.1} parent=47 // pred_region
        %p1469 = scmp.lt.s32.totalorder %s22, 1
        %s1470 = scalar_select %p1469, %s22, 1
        %p1471 = scmp.lt.s32.totalorder %s23, 0
        %s1472 = scalar_select %p1471, %s23, 0
        %s1473 = smul.addr %s1470, 16
        %s1474 = sadd.s32 %s1472, %s1473
        %s1475 = smul.addr %s1474, 8
        %s1476 = scalar_lea.vmem %s5, %s1475
      $region52: #{vit_encoder_2d.1} parent=47 // pred_fallthru
        _
    $region48: #{vit_encoder_2d.1} parent=5 // pred_fallthru
      _
  $region6: #{vit_encoder_2d.1} parent=0 // loop_footer
    %s15 = sadd.s32 1, %s11
  $region7: #{vit_encoder_2d.1} parent=0 // loop_footer_branch
    %10 = sbr.rel target = $region3
  $region8: #{vit_encoder_2d.1} parent=0 // loop_exit
    _

</llo_original>
